<compile_context>
chip_gen: v7x
topology: tpu7x:2x2x1
jax: 0.10.0
libtpu: 0.0.40
codegen_flags: <defaults>
</compile_context>

<pallas_src>
import jax
import jax.numpy as jnp
from jax.experimental import pallas as pl
from jax.experimental.pallas import tpu as pltpu


def _round_up(x, m):
    return ((x + m - 1) // m) * m


def _pick_tile(dim, want, align):
    """Largest multiple of `align` that divides `dim`, capped at `want`.

    Assumes `dim` is itself a multiple of `align`.
    """
    t = max(align, (min(want, dim) // align) * align)
    while dim % t:
        t -= align
    return t


# ---------------------------------------------------------------------------
# Kernels
# ---------------------------------------------------------------------------
def _fused_kernel(x_ref, w_ref, b_ref, o_ref):
    # KP == 1 fast path: whole per-partition K strip resident in VMEM.
    # x_ref: (TM, in_p)  w_ref: (1, in_p, TN)  b_ref: (1, 1, TN) f32
    # o_ref: (TM, TN)
    acc = jnp.dot(x_ref[...], w_ref[0], preferred_element_type=jnp.float32)
    o_ref[...] = (acc + b_ref[0]).astype(o_ref.dtype)


def _ktiled_kernel(x_ref, w_ref, b_ref, o_ref, acc_ref):
    # Fallback for huge in_p: K grid axis (last, "arbitrary") with an f32
    # VMEM accumulator; bias folded into the k==0 init.
    k = pl.program_id(3)

    @pl.when(k == 0)
    def _init():
        acc_ref[...] = jnp.broadcast_to(b_ref[0], acc_ref.shape)

    acc_ref[...] += jnp.dot(x_ref[...], w_ref[0],
                            preferred_element_type=jnp.float32)

    @pl.when(k == pl.num_programs(3) - 1)
    def _store():
        o_ref[...] = acc_ref[...].astype(o_ref.dtype)


# ---------------------------------------------------------------------------
# Wrapper
# ---------------------------------------------------------------------------
def partitioned_linear(x, weights, biases, num_partitions, *,
                       tm=512, tn=1024, tk=512,
                       compute_dtype=jnp.bfloat16,
                       weight_buffer_count=2):
    """Block-diagonal linear: out[:, p-th slice] = x[:, p-th slice] @ W_p + b_p.

    x: (B, in_features); weights: (P, in_p, out_p); biases: (P, out_p).

    NOTE: compute_dtype defaults to bfloat16 (full-rate MXU inputs with f32
    accumulation).  Pass compute_dtype=jnp.float32 for bit-accurate parity
    with an f32 PyTorch forward.
    """
    B, in_features = x.shape
    P = int(num_partitions)
    in_p = in_features // P
    out_p = weights.shape[-1]
    out_dtype = x.dtype
    x_bytes = jnp.dtype(compute_dtype).itemsize
    o_bytes = jnp.dtype(out_dtype).itemsize

    # ---- lane/sublane alignment (no-ops for production-sized partitions) ----
    in_p_pad = _round_up(in_p, 128)
    out_p_pad = _round_up(out_p, 128)
    B_pad = _round_up(B, 8)          # sublane-align the batch (never TM = B < 8)

    x_c = x.astype(compute_dtype)
    w_c = weights.astype(compute_dtype)
    b_f32 = biases.astype(jnp.float32)

    if in_p_pad != in_p:
        # TODO(synk): tiny/unaligned partitions (in_p/out_p < 128) pay one
        # relayout pass here and waste MXU lanes; production use at such sizes
        # should pack partitions into one 128-lane tile or use an XLA einsum.
        x_c = jnp.concatenate(
            [jnp.pad(c, ((0, 0), (0, in_p_pad - in_p)))
             for c in jnp.split(x_c, P, axis=1)], axis=1)
        w_c = jnp.pad(w_c, ((0, 0), (0, in_p_pad - in_p), (0, 0)))
    if out_p_pad != out_p:
        w_c = jnp.pad(w_c, ((0, 0), (0, 0), (0, out_p_pad - out_p)))
        b_f32 = jnp.pad(b_f32, ((0, 0), (0, out_p_pad - out_p)))
    if B_pad != B:
        x_c = jnp.pad(x_c, ((0, B_pad - B), (0, 0)))
    b_f32 = b_f32.reshape(P, 1, out_p_pad)

    # ---- VMEM budget from the actual chip (v7x: 64 MiB/TC; v5e/v6e: 128) ----
    try:
        vmem_cap = int(pltpu.get_tpu_info().vmem_capacity_bytes)
    except Exception:
        vmem_cap = 64 * 2 ** 20      # conservative: assume the smallest (v7x)
    budget = max(24 * 2 ** 20, vmem_cap - 16 * 2 ** 20)

    wbuf = max(2, int(weight_buffer_count))

    def footprint(TM_, TK_, TN_, with_acc):
        f = (2 * (TM_ * TK_ * x_bytes + TN_ * 4 + TM_ * TN_ * o_bytes)
             + wbuf * TK_ * TN_ * x_bytes)
        if with_acc:
            f += TM_ * TN_ * 4
        return f

    # ---- tile selection ------------------------------------------------------
    TM = _pick_tile(B_pad, tm, 8)
    TN = _pick_tile(out_p_pad, tn, 128)

    # Keep >= 2 parallel grid points so both v7x TensorCores get work.
    if P * (B_pad // TM) * (out_p_pad // TN) < 2:
        new_tn = _pick_tile(out_p_pad, max(128, TN // 2), 128)
        if new_tn < TN:
            TN = new_tn
        else:
            new_tm = _pick_tile(B_pad, max(8, TM // 2), 8)
            if new_tm < TM:
                TM = new_tm

    # Prefer KP == 1: x strip resident across the whole N loop, no scratch.
    TK = in_p_pad
    while footprint(TM, TK, TN, False) > budget and TN > 128:
        TN = _pick_tile(out_p_pad, max(128, TN // 2), 128)
    while footprint(TM, TK, TN, False) > budget and TM > 8:
        TM = _pick_tile(B_pad, max(8, TM // 2), 8)
    single_shot = footprint(TM, TK, TN, False) <= budget
    if not single_shot:
        TK = _pick_tile(in_p_pad, tk, 128)
        while footprint(TM, TK, TN, True) > budget and TK > 128:
            TK = _pick_tile(in_p_pad, max(128, TK // 2), 128)

    KP = in_p_pad // TK
    NP = out_p_pad // TN
    MT = B_pad // TM

    fp = footprint(TM, TK, TN, not single_shot)
    vmem_limit = int(min(vmem_cap - 4 * 2 ** 20,
                         max(32 * 2 ** 20, fp + 8 * 2 ** 20)))

    cost = pl.CostEstimate(
        flops=2 * B_pad * P * in_p_pad * out_p_pad,
        transcendentals=0,
        bytes_accessed=int(B_pad * P * in_p_pad * x_bytes
                           + P * in_p_pad * out_p_pad * x_bytes
                           + P * out_p_pad * 4
                           + B_pad * P * out_p_pad * o_bytes))

    w_spec_kwargs = {}
    if wbuf > 2:
        # Third weight buffer hides the largest per-step DMA (mainly useful on
        # v6e's 128 MiB VMEM); footprint/budget above already account for it.
        w_spec_kwargs["pipeline_mode"] = pl.Buffered(wbuf)

    out_shape = jax.ShapeDtypeStruct((B_pad, P * out_p_pad), out_dtype)

    if single_shot:
        grid = (P, MT, NP)
        out_full = pl.pallas_call(
            _fused_kernel,
            out_shape=out_shape,
            grid_spec=pltpu.PrefetchScalarGridSpec(
                num_scalar_prefetch=0,
                grid=grid,
                in_specs=[
                    # x read in its native (B, in_features) layout; block index
                    # is independent of n, so the strip stays resident across
                    # the whole N loop (single HBM read per (p, m)).
                    pl.BlockSpec((TM, in_p_pad), lambda p, m, n: (m, p)),
                    pl.BlockSpec((1, in_p_pad, TN),
                                 lambda p, m, n: (p, 0, n), **w_spec_kwargs),
                    pl.BlockSpec((1, 1, TN), lambda p, m, n: (p, 0, n)),
                ],
                # Output written directly as (B, out_features), lane-dense.
                out_specs=pl.BlockSpec((TM, TN),
                                       lambda p, m, n: (m, p * NP + n)),
            ),
            compiler_params=pltpu.CompilerParams(
                dimension_semantics=("parallel", "parallel", "parallel"),
                vmem_limit_bytes=vmem_limit),
            cost_estimate=cost,
        )(x_c, w_c, b_f32)
    else:
        grid = (P, MT, NP, KP)
        out_full = pl.pallas_call(
            _ktiled_kernel,
            out_shape=out_shape,
            grid_spec=pltpu.PrefetchScalarGridSpec(
                num_scalar_prefetch=0,
                grid=grid,
                in_specs=[
                    pl.BlockSpec((TM, TK),
                                 lambda p, m, n, k: (m, p * KP + k)),
                    pl.BlockSpec((1, TK, TN),
                                 lambda p, m, n, k: (p, k, n),
                                 **w_spec_kwargs),
                    pl.BlockSpec((1, 1, TN), lambda p, m, n, k: (p, 0, n)),
                ],
                out_specs=pl.BlockSpec((TM, TN),
                                       lambda p, m, n, k: (m, p * NP + n)),
                scratch_shapes=[pltpu.VMEM((TM, TN), jnp.float32)],
            ),
            compiler_params=pltpu.CompilerParams(
                dimension_semantics=("parallel", "parallel", "parallel",
                                     "arbitrary"),
                vmem_limit_bytes=vmem_limit),
            cost_estimate=cost,
        )(x_c, w_c, b_f32)

    out = out_full
    if B_pad != B:
        out = out[:B]
    if out_p_pad != out_p:
        out = jnp.concatenate(
            [out[:, i * out_p_pad: i * out_p_pad + out_p] for i in range(P)],
            axis=1)
    return out


if __name__ == "__main__":
    # --- Module-spec shapes (tiny; exercises the padded fallback path). ---
    in_features = 8
    out_features = 4
    num_partitions = 2
    batch = 1
    in_p = in_features // num_partitions       # 4
    out_p = out_features // num_partitions     # 2

    key = jax.random.PRNGKey(0)
    kx, kw, kb, kx2, kw2, kb2 = jax.random.split(key, 6)

    x = jax.random.normal(kx, (batch, in_features), dtype=jnp.float32)
    bound = 1.0 / (in_p ** 0.5)
    weights = jax.random.uniform(kw, (num_partitions, in_p, out_p),
                                 dtype=jnp.float32, minval=-bound, maxval=bound)
    biases = jax.random.uniform(kb, (num_partitions, out_p),
                                dtype=jnp.float32, minval=-bound, maxval=bound)

    x_split = jnp.split(x, num_partitions, axis=1)
    ref = jnp.concatenate(
        [x_split[i] @ weights[i] + biases[i] for i in range(num_partitions)],
        axis=1)

    # Explicit f32 compute: parity with the f32 PyTorch module semantics.
    out_f32 = jax.block_until_ready(
        partitioned_linear(x, weights, biases, num_partitions,
                           compute_dtype=jnp.float32))
    assert out_f32.shape == (batch, out_features)
    assert jnp.allclose(out_f32, ref, atol=1e-5), "mismatch (tiny, f32)"

    # Default path (bf16 MXU inputs, f32 accumulation).
    out_bf16 = jax.block_until_ready(
        partitioned_linear(x, weights, biases, num_partitions))
    assert out_bf16.shape == (batch, out_features)
    assert jnp.allclose(out_bf16, ref, atol=3e-2, rtol=3e-2), \
        "mismatch (tiny, bf16 default)"

    # --- Lane-aligned shapes (zero-copy, KP==1 single-shot fast path). ---
    B2, IN2, P2 = 256, 1024, 2
    inp2, outp2 = IN2 // P2, 256
    x2 = jax.random.normal(kx2, (B2, IN2), dtype=jnp.float32)
    w2 = jax.random.normal(kw2, (P2, inp2, outp2), dtype=jnp.float32) * 0.02
    b2 = jax.random.normal(kb2, (P2, outp2), dtype=jnp.float32)
    out2 = jax.block_until_ready(partitioned_linear(x2, w2, b2, P2))
    x2s = jnp.split(x2, P2, axis=1)
    ref2 = jnp.concatenate([x2s[i] @ w2[i] + b2[i] for i in range(P2)], axis=1)
    assert out2.shape == (B2, P2 * outp2)
    assert jnp.allclose(out2, ref2, atol=3e-2, rtol=3e-2), "mismatch (aligned)"

    print("KERNEL_OK")
</pallas_src>

<mosaic_0001>
module attributes {stable_mosaic.version = 11 : i64} {
  func.func @_fused_kernel(%arg0: i32, %arg1: i32, %arg2: i32, %arg3: memref<8x128xf32, #tpu.memory_space<vmem>>, %arg4: memref<1x128x128xf32, #tpu.memory_space<vmem>>, %arg5: memref<1x1x128xf32, #tpu.memory_space<vmem>>, %arg6: memref<8x128xf32, #tpu.memory_space<vmem>>) attributes {dimension_semantics = [#tpu.dimension_semantics<parallel>, #tpu.dimension_semantics<parallel>, #tpu.dimension_semantics<parallel>], iteration_bounds = array<i64: 2, 1, 1>, scalar_prefetch = 0 : i64, scratch_operands = 0 : i64, tpu.core_type = #tpu.core_type<tc>, window_params = [{transform_indices = @transform_0, window_bounds = array<i64: 8, 128>}, {transform_indices = @transform_1, window_bounds = array<i64: 1, 128, 128>}, {transform_indices = @transform_2, window_bounds = array<i64: 1, 1, 128>}, {transform_indices = @transform_3, window_bounds = array<i64: 8, 128>}]} {
    %c0 = arith.constant 0 : index
    %c0_0 = arith.constant 0 : index
    %0 = vector.load %arg3[%c0, %c0_0] : memref<8x128xf32, #tpu.memory_space<vmem>>, vector<8x128xf32>
    %c0_1 = arith.constant 0 : index
    %c0_2 = arith.constant 0 : index
    %c0_3 = arith.constant 0 : index
    %1 = vector.load %arg4[%c0_1, %c0_2, %c0_3] : memref<1x128x128xf32, #tpu.memory_space<vmem>>, vector<1x128x128xf32>
    %2 = vector.shape_cast %1 : vector<1x128x128xf32> to vector<128x128xf32>
    %cst = arith.constant dense<0.000000e+00> : vector<8x128xf32>
    %3 = tpu.matmul %0, %2, %cst {dimension_numbers = #tpu.dot_dimension_numbers<[1], [0], [0], [1], [0, 0, 1, 1], [], []>} : vector<8x128xf32>, vector<128x128xf32>, vector<8x128xf32> -> vector<8x128xf32>
    %c0_4 = arith.constant 0 : index
    %c0_5 = arith.constant 0 : index
    %c0_6 = arith.constant 0 : index
    %4 = vector.load %arg5[%c0_4, %c0_5, %c0_6] : memref<1x1x128xf32, #tpu.memory_space<vmem>>, vector<1x1x128xf32>
    %5 = vector.shape_cast %4 : vector<1x1x128xf32> to vector<1x128xf32>
    %6 = vector.broadcast %5 : vector<1x128xf32> to vector<8x128xf32>
    %7 = arith.addf %3, %6 : vector<8x128xf32>
    %c0_7 = arith.constant 0 : index
    %c0_8 = arith.constant 0 : index
    %8 = vector.load %arg6[%c0_7, %c0_8] : memref<8x128xf32, #tpu.memory_space<vmem>>, vector<8x128xf32>
    tpu.vector_store %arg6[%c0_7, %c0_8], %7 {strides = array<i32>} : memref<8x128xf32, #tpu.memory_space<vmem>>, vector<8x128xf32>,
    return
  }
  func.func @transform_0(%arg0: i32, %arg1: i32, %arg2: i32) -> (i32, i32) {
    %c0_i32 = arith.constant 0 : i32
    return %arg1, %arg0 : i32, i32
  }
  func.func @transform_1(%arg0: i32, %arg1: i32, %arg2: i32) -> (i32, i32, i32) {
    %c0_i32 = arith.constant 0 : i32
    %c0_i32_0 = arith.constant 0 : i32
    return %arg0, %c0_i32, %arg2 : i32, i32, i32
  }
  func.func @transform_2(%arg0: i32, %arg1: i32, %arg2: i32) -> (i32, i32, i32) {
    %c0_i32 = arith.constant 0 : i32
    %c0_i32_0 = arith.constant 0 : i32
    return %arg0, %c0_i32, %arg2 : i32, i32, i32
  }
  func.func @transform_3(%arg0: i32, %arg1: i32, %arg2: i32) -> (i32, i32) {
    %c1_i32 = arith.constant 1 : i32
    %0 = arith.muli %arg0, %c1_i32 : i32
    %1 = arith.addi %0, %arg2 : i32
    %c0_i32 = arith.constant 0 : i32
    return %arg1, %1 : i32, i32
  }
}

</mosaic_0001>

<llo_original>
// kernel: tpu_custom_call.1
$region0: #{tpu_custom_call.1}
  #allocation0 [shape = 'u32[]', space=smem, size = 0x4, offset = 0x4, fixed_abs, tag = 'smem constant byte address 0x4 - core index']
  #allocation1 [shape = 'u32[144,128]{1,0:T(1,128)}', space=vmem, size = 0x12000, scoped, tag = 'internal scratch']
  %s0 = inlined_call_operand.hbm [shape: f32[8,256], index: 0, kind: input, shape index: {}]
  %s1 = inlined_call_operand.hbm [shape: f32[2,128,128], index: 1, kind: input, shape index: {}]
  %s2 = inlined_call_operand.vmem [shape: f32[2,1,128], index: 2, kind: input, shape index: {}]
  %s3 = inlined_call_operand.hbm [shape: f32[8,256], index: 3, kind: output, shape index: {}]
  %s4 = sld [smem:[#allocation0]]
  $region53: #{tpu_custom_call.1} parent=0
    _
  %s6 = ssub.s32 1, %s4
  %s7 = scalar_select 0, %s6, %s4
  $region1: #{tpu_custom_call.1} parent=0
    #allocation2 [shape = 'u8[8192]{0}', space=vmem, size = 0x2000, scoped, tag = 'input window, operand 0']
    #allocation3 [shape = 's32[2]{0}', space=sflag, size = 0x8, scoped, tag = 'scoped memory for tpu_custom_call.1']
    #allocation4 [shape = 's32[2]{0}', space=sflag, size = 0x8, scoped, tag = 'scoped memory for tpu_custom_call.1']
    #allocation5 [shape = 'u8[131072]{0}', space=vmem, size = 0x20000, scoped, tag = 'input window, operand 1']
    #allocation6 [shape = 's32[2]{0}', space=sflag, size = 0x8, scoped, tag = 'scoped memory for tpu_custom_call.1']
    #allocation7 [shape = 'u8[8192]{0}', space=vmem, size = 0x2000, scoped, tag = 'output window, operand 0']
    %8 = vsyncpa [#allocation3], 0
    %s9 = scalar_lea.sflag [#allocation3], 1
    %10 = vsyncpa %s9, 0
    %11 = vsyncpa [#allocation6], 0
    %s12 = scalar_lea.sflag [#allocation6], 1
    %13 = vsyncpa %s12, 0
    %14 = vsyncpa [#allocation4], 0
    %s15 = scalar_lea.sflag [#allocation4], 1
    %16 = vsyncpa %s15, 0
    loop: start=0, step=1, limit=4
    $region2: #{tpu_custom_call.1} parent=1 // loop_pre_header
      _
    $region3: #{tpu_custom_call.1} parent=1 // loop_header
      %s18 = sphi 0, %s22
      %p19 = scmp.ge.s32.totalorder %s18, 4
      %s25 = sphi 0, %s44
      %s26 = sphi 0, %s40
      %s27 = sphi 0, %s36
      %s28 = sphi 0, %s25
      %s29 = sphi 0, %s26
      %s30 = sphi 0, %s27
      %s31 = sphi 0, %s28
      %s32 = sphi 0, %s29
      %s33 = sphi 0, %s30
      %s49 = sphi 0, %s51
      %s52 = sphi 0, %s49
      %s53 = sphi 0, %s52
      %s69 = sphi 0, %s53
      %s77 = sphi 0, %s79
      %s80 = sphi 0, %s77
      %s81 = sphi 0, %s80
      %s97 = sphi 0, %s81
      %s105 = sphi 0, %s107
      %s108 = sphi 0, %s105
      %s109 = sphi 0, %s108
      %s125 = sphi 0, %s109
      %s135 = sphi 0, %s137
      %s138 = sphi 0, %s135
      %s139 = sphi 0, %s138
      %s155 = sphi 0, %s139
    $region4: #{tpu_custom_call.1} parent=1 // loop_header_branch
      %21 = sbr.rel (%p19) target = $region8
    $region5: #{tpu_custom_call.1} parent=1 // loop_body
      %s23 = ssub.s32 %s18, 1
      %s24 = ssub.s32 %s18, 2
      %s34 = sadd.s32 1, %s27
      %p35 = scmp.ge.s32.totalorder %s34, 1
      %s36 = scalar_select %p35, 0, %s34
      %s37 = sadd.s32 1, %s26
      %s38 = scalar_select %p35, %s37, %s26
      %p39 = scmp.ge.s32.totalorder %s38, 1
      %s40 = scalar_select %p39, 0, %s38
      %s41 = sadd.s32 1, %s25
      %s42 = scalar_select %p39, %s41, %s25
      %p43 = scmp.ge.s32.totalorder %s42, 2
      %s44 = scalar_select %p43, 0, %s42
      %s45 = ssub.s32 %s26, %s40
      %s46 = ssub.s32 %s25, %s44
      %s47 = sor.u32 %s45, %s46
      %p48 = scmp.eq.s32.totalorder %s47, 0
      %s50 = sadd.s32 %s49, 1
      %s51 = scalar_select %p48, %s49, %s50
      %p54 = pneg %p48
      %p55 = scmp.eq.s32.totalorder %s18, 1
      %p56 = por %p54, %p55
      %p57 = scmp.ne.s32.totalorder %s49, %s52
      %p58 = scmp.eq.s32.totalorder %s18, 0
      %p59 = por %p57, %p58
      %p60 = scmp.ne.s32.totalorder %s49, %s52
      %p61 = scmp.eq.s32.totalorder %s23, 1
      %p62 = por %p60, %p61
      %p63 = scmp.ne.s32.totalorder %s52, %s53
      %p64 = scmp.eq.s32.totalorder %s23, 0
      %p65 = por %p63, %p64
      %p66 = scmp.ne.s32.totalorder %s52, %s53
      %p67 = scmp.eq.s32.totalorder %s24, 1
      %p68 = por %p66, %p67
      %p70 = scmp.ne.s32.totalorder %s53, %s69
      %p71 = scmp.eq.s32.totalorder %s24, 0
      %p72 = por %p70, %p71
      %s73 = ssub.s32 %s25, %s44
      %s74 = ssub.s32 %s27, %s36
      %s75 = sor.u32 %s73, %s74
      %p76 = scmp.eq.s32.totalorder %s75, 0
      %s78 = sadd.s32 %s77, 1
      %s79 = scalar_select %p76, %s77, %s78
      %p82 = pneg %p76
      %p83 = scmp.eq.s32.totalorder %s18, 1
      %p84 = por %p82, %p83
      %p85 = scmp.ne.s32.totalorder %s77, %s80
      %p86 = scmp.eq.s32.totalorder %s18, 0
      %p87 = por %p85, %p86
      %p88 = scmp.ne.s32.totalorder %s77, %s80
      %p89 = scmp.eq.s32.totalorder %s23, 1
      %p90 = por %p88, %p89
      %p91 = scmp.ne.s32.totalorder %s80, %s81
      %p92 = scmp.eq.s32.totalorder %s23, 0
      %p93 = por %p91, %p92
      %p94 = scmp.ne.s32.totalorder %s80, %s81
      %p95 = scmp.eq.s32.totalorder %s24, 1
      %p96 = por %p94, %p95
      %p98 = scmp.ne.s32.totalorder %s81, %s97
      %p99 = scmp.eq.s32.totalorder %s24, 0
      %p100 = por %p98, %p99
      %s101 = ssub.s32 %s25, %s44
      %s102 = ssub.s32 %s27, %s36
      %s103 = sor.u32 %s101, %s102
      %p104 = scmp.eq.s32.totalorder %s103, 0
      %s106 = sadd.s32 %s105, 1
      %s107 = scalar_select %p104, %s105, %s106
      %p110 = pneg %p104
      %p111 = scmp.eq.s32.totalorder %s18, 1
      %p112 = por %p110, %p111
      %p113 = scmp.ne.s32.totalorder %s105, %s108
      %p114 = scmp.eq.s32.totalorder %s18, 0
      %p115 = por %p113, %p114
      %p116 = scmp.ne.s32.totalorder %s105, %s108
      %p117 = scmp.eq.s32.totalorder %s23, 1
      %p118 = por %p116, %p117
      %p119 = scmp.ne.s32.totalorder %s108, %s109
      %p120 = scmp.eq.s32.totalorder %s23, 0
      %p121 = por %p119, %p120
      %p122 = scmp.ne.s32.totalorder %s108, %s109
      %p123 = scmp.eq.s32.totalorder %s24, 1
      %p124 = por %p122, %p123
      %p126 = scmp.ne.s32.totalorder %s109, %s125
      %p127 = scmp.eq.s32.totalorder %s24, 0
      %p128 = por %p126, %p127
      %s129 = sadd.s32 %s25, %s27
      %s130 = sadd.s32 %s44, %s36
      %s131 = ssub.s32 %s26, %s40
      %s132 = ssub.s32 %s129, %s130
      %s133 = sor.u32 %s131, %s132
      %p134 = scmp.eq.s32.totalorder %s133, 0
      %s136 = sadd.s32 %s135, 1
      %s137 = scalar_select %p134, %s135, %s136
      %p140 = pneg %p134
      %p141 = scmp.eq.s32.totalorder %s18, 1
      %p142 = por %p140, %p141
      %p143 = scmp.ne.s32.totalorder %s135, %s138
      %p144 = scmp.eq.s32.totalorder %s18, 0
      %p145 = por %p143, %p144
      %p146 = scmp.ne.s32.totalorder %s135, %s138
      %p147 = scmp.eq.s32.totalorder %s23, 1
      %p148 = por %p146, %p147
      %p149 = scmp.ne.s32.totalorder %s138, %s139
      %p150 = scmp.eq.s32.totalorder %s23, 0
      %p151 = por %p149, %p150
      %p152 = scmp.ne.s32.totalorder %s138, %s139
      %p153 = scmp.eq.s32.totalorder %s24, 1
      %p154 = por %p152, %p153
      %p156 = scmp.ne.s32.totalorder %s139, %s155
      %p157 = scmp.eq.s32.totalorder %s24, 0
      %p158 = por %p156, %p157
      %p159 = scmp.le.s32.totalorder 1, %s18
      %p160 = scmp.lt.s32.totalorder %s18, 3
      %p161 = pnand %p159, %p160
      %p162 = pneg %p161
      // Predicated region
      $region9: #{tpu_custom_call.1} parent=5 // pred_check
        _
      $region10: #{tpu_custom_call.1} parent=5 // pred_check_branch
        %164 = sbr.rel (%p161) target = $region12
      $region11: #{tpu_custom_call.1} parent=5 // pred_region
        %s165 = ssub.s32 %s18, 1
      $region12: #{tpu_custom_call.1} parent=5 // pred_fallthru
        _
      %p166 = scmp.lt.s32.totalorder %s18, 2
      // Predicated region
      $region13: #{tpu_custom_call.1} parent=5 // pred_check
        %p167 = pneg %p166
      $region14: #{tpu_custom_call.1} parent=5 // pred_check_branch
        %169 = sbr.rel (%p167) target = $region16
      $region15: #{tpu_custom_call.1} parent=5 // pred_region
        // Predicated region
        $region17: #{tpu_custom_call.1} parent=15 // pred_check
          %p170 = pneg %p59
        $region18: #{tpu_custom_call.1} parent=15 // pred_check_branch
          %172 = sbr.rel (%p170) target = $region20
        $region19: #{tpu_custom_call.1} parent=15 // pred_region
          %s173 = sand.u32 %s49, 1
          %s174 = scalar_lea.sflag [#allocation3], %s173
          %s175 = sand.u32 %s49, 1
          %s176 = smul.addr %s175, 8
          %s177 = scalar_lea.vmem [#allocation2], %s176
          %s179 = ssub.s32 128, 128
          %180 = vsyncadd %s174, %s179
          %s181 = smul.addr %s26, 2
          %s182 = sadd.s32 %s25, %s181
          %s183 = smul.addr %s182, 128
          %s184 = scalar_lea.hbm %s0, %s183
          %s186 = sshll.u32 %s177, 4
          %s187 = int_to_ptr.vmem [resolvable:$true] %s186
          %189 = dma.hbm_to_vmem [thread:$0]  %s184, 128, %s187, %s174
        $region20: #{tpu_custom_call.1} parent=15 // pred_fallthru
          _
        // Predicated region
        $region21: #{tpu_custom_call.1} parent=15 // pred_check
          %p190 = pneg %p87
        $region22: #{tpu_custom_call.1} parent=15 // pred_check_branch
          %192 = sbr.rel (%p190) target = $region24
        $region23: #{tpu_custom_call.1} parent=15 // pred_region
          %s193 = sand.u32 %s77, 1
          %s194 = scalar_lea.sflag [#allocation6], %s193
          %s195 = sand.u32 %s77, 1
          %s196 = smul.addr %s195, 128
          %s197 = scalar_lea.vmem [#allocation5], %s196
          %s199 = ssub.s32 2048, 2048
          %200 = vsyncadd %s194, %s199
          %s201 = smul.addr %s25, 16
          %s202 = sadd.s32 %s27, %s201
          %s203 = smul.addr %s202, 128
          %s204 = scalar_lea.hbm %s1, %s203
          %s205 = sshll.u32 %s197, 4
          %s206 = int_to_ptr.vmem [resolvable:$true] %s205
          %211 = dma.hbm_to_vmem [thread:$0]  %s204, 2048, %s206, %s194, 128, 128, 8
        $region24: #{tpu_custom_call.1} parent=15 // pred_fallthru
          _
        // Predicated region
        $region25: #{tpu_custom_call.1} parent=15 // pred_check
          %p212 = pneg %p115
        $region26: #{tpu_custom_call.1} parent=15 // pred_check_branch
          %214 = sbr.rel (%p212) target = $region28
        $region27: #{tpu_custom_call.1} parent=15 // pred_region
          %p215 = scmp.lt.s32.totalorder %s25, 1
          %s216 = scalar_select %p215, %s25, 1
          %p217 = scmp.lt.s32.totalorder %s27, 0
          %s218 = scalar_select %p217, %s27, 0
          %s219 = sadd.s32 %s218, %s216
          %s220 = scalar_lea.vmem %s2, %s219
        $region28: #{tpu_custom_call.1} parent=15 // pred_fallthru
          _
      $region16: #{tpu_custom_call.1} parent=5 // pred_fallthru
        _
      %p221 = scmp.le.s32.totalorder 1, %s18
      %p222 = scmp.lt.s32.totalorder %s18, 3
      %p223 = pnand %p221, %p222
      %p224 = pneg %p223
      // Predicated region
      $region29: #{tpu_custom_call.1} parent=5 // pred_check
        _
      $region30: #{tpu_custom_call.1} parent=5 // pred_check_branch
        %226 = sbr.rel (%p223) target = $region32
      $region31: #{tpu_custom_call.1} parent=5 // pred_region
        %s227 = ssub.s32 %s18, 1
        %s228 = sand.u32 %s52, 1
        %s229 = scalar_lea.sflag [#allocation3], %s228
        %s230 = sand.u32 %s52, 1
        %s231 = smul.addr %s230, 8
        %s232 = scalar_lea.vmem [#allocation2], %s231
        // Predicated region
        $region33: #{tpu_custom_call.1} parent=31 // pred_check
          %p233 = pneg %p65
        $region34: #{tpu_custom_call.1} parent=31 // pred_check_branch
          %235 = sbr.rel (%p233) target = $region36
        $region35: #{tpu_custom_call.1} parent=31 // pred_region
          %236 = dma.done %s229, 128
        $region36: #{tpu_custom_call.1} parent=31 // pred_fallthru
          _
        %s237 = sand.u32 %s80, 1
        %s238 = scalar_lea.sflag [#allocation6], %s237
        %s239 = sand.u32 %s80, 1
        %s240 = smul.addr %s239, 128
        %s241 = scalar_lea.vmem [#allocation5], %s240
        // Predicated region
        $region37: #{tpu_custom_call.1} parent=31 // pred_check
          %p242 = pneg %p93
        $region38: #{tpu_custom_call.1} parent=31 // pred_check_branch
          %244 = sbr.rel (%p242) target = $region40
        $region39: #{tpu_custom_call.1} parent=31 // pred_region
          %245 = dma.done %s238, 2048
        $region40: #{tpu_custom_call.1} parent=31 // pred_fallthru
          _
        %s246 = sand.u32 %s52, 1
        %s247 = scalar_lea.sflag [#allocation3], %s246
        %s248 = sand.u32 %s52, 1
        %s249 = smul.addr %s248, 8
        %s250 = scalar_lea.vmem [#allocation2], %s249
        %p251 = pneg %p65
        %p252 = pneg %p62
        %s253 = sand.u32 %s80, 1
        %s254 = scalar_lea.sflag [#allocation6], %s253
        %s255 = sand.u32 %s80, 1
        %s256 = smul.addr %s255, 128
        %s257 = scalar_lea.vmem [#allocation5], %s256
        %p258 = pneg %p93
        %p259 = pneg %p90
        %p260 = scmp.lt.s32.totalorder %s28, 1
        %s261 = scalar_select %p260, %s28, 1
        %p262 = scmp.lt.s32.totalorder %s30, 0
        %s263 = scalar_select %p262, %s30, 0
        %s264 = sadd.s32 %s263, %s261
        %s265 = scalar_lea.vmem %s2, %s264
        %p266 = pneg %p121
        %p267 = pneg %p118
        %p268 = pneg %p151
        %p269 = pneg %p148
        %s270 = sand.u32 %s138, 1
        %s271 = scalar_lea.sflag [#allocation4], %s270
        %s272 = sand.u32 %s138, 1
        %s273 = smul.addr %s272, 8
        %s274 = scalar_lea.vmem [#allocation7], %s273
        %p275 = scmp.lt.s32.totalorder %s28, 1
        %s276 = scalar_select %p275, %s28, 1
        %p277 = scmp.lt.s32.totalorder %s30, 0
        %s278 = scalar_select %p277, %s30, 0
        %s279 = sadd.s32 %s278, %s276
        %s280 = scalar_lea.vmem %s2, %s279
        %s281 = sadd.s32 %s28, %s30
        %v282 = vld [vmem:[%s232] sm:$0xff]
        %v283 = vld [vmem:[%s241] sm:$0xff]
        %v284 = vld [vmem:[%s241 + $0x8] sm:$0xff]
        %v285 = vld [vmem:[%s241 + $0x10] sm:$0xff]
        %v286 = vld [vmem:[%s241 + $0x18] sm:$0xff]
        %v287 = vld [vmem:[%s241 + $0x20] sm:$0xff]
        %v288 = vld [vmem:[%s241 + $0x28] sm:$0xff]
        %v289 = vld [vmem:[%s241 + $0x30] sm:$0xff]
        %v290 = vld [vmem:[%s241 + $0x38] sm:$0xff]
        %v291 = vld [vmem:[%s241 + $0x40] sm:$0xff]
        %v292 = vld [vmem:[%s241 + $0x48] sm:$0xff]
        %v293 = vld [vmem:[%s241 + $0x50] sm:$0xff]
        %v294 = vld [vmem:[%s241 + $0x58] sm:$0xff]
        %v295 = vld [vmem:[%s241 + $0x60] sm:$0xff]
        %v296 = vld [vmem:[%s241 + $0x68] sm:$0xff]
        %v297 = vld [vmem:[%s241 + $0x70] sm:$0xff]
        %v298 = vld [vmem:[%s241 + $0x78] sm:$0xff]
        %v299 = vld [vmem:[%s280] sm:$0x1]
        %v301 = vlaneseq
        %v302 = vshrl.u32 %v301, 7
        %v303 = vsub.s32 0, %v302
        %v304 = vrot.slane %v299, %v303
        %306 = vmatprep.subr.mxu0 0.0
        %307 = vmatpush1.msra.mxu0 %v283
        %308 = vmatprep.subr.mxu0 0.0
        %309 = vmatpush1.msra.mxu0 %v284
        %310 = vmatprep.subr.mxu0 0.0
        %311 = vmatpush1.msra.mxu0 %v285
        %312 = vmatprep.subr.mxu0 0.0
        %313 = vmatpush1.msra.mxu0 %v286
        %314 = vmatprep.subr.mxu0 0.0
        %315 = vmatpush1.msra.mxu0 %v287
        %316 = vmatprep.subr.mxu0 0.0
        %317 = vmatpush1.msra.mxu0 %v288
        %318 = vmatprep.subr.mxu0 0.0
        %319 = vmatpush1.msra.mxu0 %v289
        %320 = vmatprep.subr.mxu0 0.0
        %321 = vmatpush1.msra.mxu0 %v290
        %322 = vmatprep.subr.mxu0 0.0
        %323 = vmatpush1.msra.mxu0 %v291
        %324 = vmatprep.subr.mxu0 0.0
        %325 = vmatpush1.msra.mxu0 %v292
        %326 = vmatprep.subr.mxu0 0.0
        %327 = vmatpush1.msra.mxu0 %v293
        %328 = vmatprep.subr.mxu0 0.0
        %329 = vmatpush1.msra.mxu0 %v294
        %330 = vmatprep.subr.mxu0 0.0
        %331 = vmatpush1.msra.mxu0 %v295
        %332 = vmatprep.subr.mxu0 0.0
        %333 = vmatpush1.msra.mxu0 %v296
        %334 = vmatprep.subr.mxu0 0.0
        %335 = vmatpush1.msra.mxu0 %v297
        %336 = vmatprep.subr.mxu0 0.0
        %337 = vmatpush1.msra.mxu0 %v298
        %338 = vmatprep.subr.mxu0 0.0
        %339 = vmatpush1.msra.mxu0 0.0
        %340 = vmatprep.subr.mxu0 0.0
        %341 = vmatpush1.msra.mxu0 0.0
        %342 = vmatprep.subr.mxu0 0.0
        %343 = vmatpush1.msra.mxu0 0.0
        %344 = vmatprep.subr.mxu0 0.0
        %345 = vmatpush1.msra.mxu0 0.0
        %346 = vmatprep.subr.mxu0 0.0
        %347 = vmatpush1.msra.mxu0 0.0
        %348 = vmatprep.subr.mxu0 0.0
        %349 = vmatpush1.msra.mxu0 0.0
        %350 = vmatprep.subr.mxu0 0.0
        %351 = vmatpush1.msra.mxu0 0.0
        %352 = vmatprep.subr.mxu0 0.0
        %353 = vmatpush1.msra.mxu0 0.0
        %354 = vmatprep.subr.mxu0 0.0
        %355 = vmatpush1.msra.mxu0 0.0
        %356 = vmatprep.subr.mxu0 0.0
        %357 = vmatpush1.msra.mxu0 0.0
        %358 = vmatprep.subr.mxu0 0.0
        %359 = vmatpush1.msra.mxu0 0.0
        %360 = vmatprep.subr.mxu0 0.0
        %361 = vmatpush1.msra.mxu0 0.0
        %362 = vmatprep.subr.mxu0 0.0
        %363 = vmatpush1.msra.mxu0 0.0
        %364 = vmatprep.subr.mxu0 0.0
        %365 = vmatpush1.msra.mxu0 0.0
        %366 = vmatprep.subr.mxu0 0.0
        %367 = vmatpush1.msra.mxu0 0.0
        %368 = vmatprep.subr.mxu0 0.0
        %369 = vmatpush1.msra.mxu0 0.0
        %370 = vmatprep.mubr.f32.mxu0 0.0
        %371 = vmatmul.mubr.f32.gmra.mrb[0].mxu0 %v282
        %v372 = vpop.f32.mrb[0].mxu0
        %v373 = vadd.f32 %v304, %v372
        %v374 = vpop.f32.mrb[0].mxu0
        %375 = vdwg.mxu0
        %376 = vst [vmem:[%s274] sm:$0xff] %v373
        %s377 = sand.u32 %s138, 1
        %s378 = scalar_lea.sflag [#allocation4], %s377
        %s379 = sand.u32 %s138, 1
        %s380 = smul.addr %s379, 8
        %s381 = scalar_lea.vmem [#allocation7], %s380
        // Predicated region
        $region41: #{tpu_custom_call.1} parent=31 // pred_check
          %p382 = pneg %p148
        $region42: #{tpu_custom_call.1} parent=31 // pred_check_branch
          %384 = sbr.rel (%p382) target = $region44
        $region43: #{tpu_custom_call.1} parent=31 // pred_region
          %s385 = sadd.s32 %s28, %s30
          %s387 = ssub.s32 128, 128
          %388 = vsyncadd %s378, %s387
          %s389 = smul.addr %s29, 2
          %s390 = sadd.s32 %s385, %s389
          %s391 = smul.addr %s390, 128
          %s392 = scalar_lea.hbm %s3, %s391
          %s394 = sshll.u32 %s381, 4
          %s395 = int_to_ptr.vmem [resolvable:$true] %s394
          %397 = dma.vmem_to_hbm [thread:$0]  %s395, 128, %s392, %s378
        $region44: #{tpu_custom_call.1} parent=31 // pred_fallthru
          _
      $region32: #{tpu_custom_call.1} parent=5 // pred_fallthru
        _
      %p398 = scmp.le.s32.totalorder 2, %s18
      // Predicated region
      $region45: #{tpu_custom_call.1} parent=5 // pred_check
        %p399 = pneg %p398
      $region46: #{tpu_custom_call.1} parent=5 // pred_check_branch
        %401 = sbr.rel (%p399) target = $region48
      $region47: #{tpu_custom_call.1} parent=5 // pred_region
        %s402 = ssub.s32 %s18, 2
        // Predicated region
        $region49: #{tpu_custom_call.1} parent=47 // pred_check
          %p403 = pneg %p154
        $region50: #{tpu_custom_call.1} parent=47 // pred_check_branch
          %405 = sbr.rel (%p403) target = $region52
        $region51: #{tpu_custom_call.1} parent=47 // pred_region
          %s406 = sand.u32 %s139, 1
          %s407 = scalar_lea.sflag [#allocation4], %s406
          %s408 = sand.u32 %s139, 1
          %s409 = smul.addr %s408, 8
          %s410 = scalar_lea.vmem [#allocation7], %s409
          %411 = dma.done %s407, 128
        $region52: #{tpu_custom_call.1} parent=47 // pred_fallthru
          _
      $region48: #{tpu_custom_call.1} parent=5 // pred_fallthru
        _
    $region6: #{tpu_custom_call.1} parent=1 // loop_footer
      %s22 = sadd.s32 1, %s18
    $region7: #{tpu_custom_call.1} parent=1 // loop_footer_branch
      %17 = sbr.rel target = $region3
    $region8: #{tpu_custom_call.1} parent=1 // loop_exit
      _
    %412 = vsyncpa [#allocation3], 1
    %s413 = scalar_lea.sflag [#allocation3], 1
    %414 = vsyncpa %s413, 1
    %415 = vsyncpa [#allocation6], 1
    %s416 = scalar_lea.sflag [#allocation6], 1
    %417 = vsyncpa %s416, 1
    %418 = vsyncpa [#allocation4], 1
    %s419 = scalar_lea.sflag [#allocation4], 1
    %420 = vsyncpa %s419, 1

</llo_original>
